<compile_context>
chip_gen: v6e
topology: v6e:2x2x1
jax: 0.10.0
libtpu: 0.0.40
codegen_flags: <defaults>
</compile_context>

<pallas_src>
import jax
import jax.numpy as jnp
import numpy as np
from jax.experimental import pallas as pl
from jax.experimental.pallas import tpu as pltpu


def _bilinear_matrix(n_in, scale=2):
    """Row-interpolation matrix matching nn.Upsample(scale_factor=2, mode='bilinear',
    align_corners=False): out = U @ in along one spatial axis. (numpy, host-side)"""
    n_out = n_in * scale
    i = np.arange(n_out, dtype=np.float64)
    src = (i + 0.5) / scale - 0.5
    src = np.maximum(src, 0.0)                 # PyTorch clamps negative source coords to 0
    i0 = np.floor(src).astype(np.int64)
    frac = src - i0
    i0 = np.minimum(i0, n_in - 1)
    i1 = np.minimum(i0 + 1, n_in - 1)
    U = np.zeros((n_out, n_in), dtype=np.float32)
    U[np.arange(n_out), i0] += (1.0 - frac).astype(np.float32)
    U[np.arange(n_out), i1] += frac.astype(np.float32)
    return U


def upconv_kernel(x_ref, a_ref, m_ref, brow_ref, o_ref, stats_ref):
    """Per-sample fused (bilinear x2 upsample + 3x3 conv + bias) as 2 bf16 MXU matmuls,
    plus lane-dense per-channel sum / sum-of-squares partials for BatchNorm."""
    wco = brow_ref.shape[-1]
    x2 = x_ref[0]                                                     # (Hin, Win*Cin) bf16

    # One wide matmul: the (W,Cin)->(Wout,Cout) mix for all three conv H-taps at once.
    p = jnp.dot(x2, m_ref[...], preferred_element_type=jnp.float32)   # (Hin, 3*WCo) f32

    # Move the tap axis from lanes to sublanes: 128-aligned lane slices + sublane concat.
    pk = jnp.concatenate(
        [p[:, 0:wco], p[:, wco:2 * wco], p[:, 2 * wco:3 * wco]], axis=0
    ).astype(jnp.bfloat16)                                            # (3*Hin, WCo)

    # Single K=3*Hin contraction: bilinear H-interpolation folded with the 3 conv H-taps.
    y = jnp.dot(a_ref[...], pk, preferred_element_type=jnp.float32) + brow_ref[...]
    o_ref[0] = y                                                      # (Hout, WCo) lane-dense

    # BatchNorm partials, lane-dense (2, WCo) rows (unmasked stores; Wout-periodic lane
    # reduction to Cout happens in the wrapper -> no tiny stats matmuls in the kernel).
    stats_ref[0, pl.ds(0, 1), :] = jnp.sum(y, axis=0, keepdims=True)
    stats_ref[0, pl.ds(1, 1), :] = jnp.sum(y * y, axis=0, keepdims=True)


def bn_relu_kernel(y_ref, scale_ref, shift_ref, o_ref):
    """Elementwise BatchNorm affine (precomputed lane-replicated scale/shift rows) + ReLU."""
    o_ref[...] = jnp.maximum(y_ref[...] * scale_ref[...] + shift_ref[...], 0.0)


def up_block_forward(x_nchw, W, b, gamma, beta, eps=1e-5):
    x_nchw = x_nchw.astype(jnp.float32)
    N, Cin, Hin, Win = x_nchw.shape
    Cout = W.shape[-1]
    Hout, Wout = 2 * Hin, 2 * Win
    WCi = Win * Cin
    WCo = Wout * Cout

    # NCHW -> lane-dense (N, Hin, Win*Cin) slab; bf16 feeds the MXU (accum stays f32 in-kernel).
    x_slab = jnp.transpose(x_nchw, (0, 2, 3, 1)).reshape(N, Hin, WCi).astype(jnp.bfloat16)

    # ---- fused upsample+conv matrices (tiny; trace-time; O(H*W*C^2), not O((H*W)^2)) ----
    U_h = _bilinear_matrix(Hin)                      # (Hout, Hin)
    U_w = _bilinear_matrix(Win)                      # (Wout, Win)
    U_h_pad = np.zeros((Hout + 2, Hin), np.float32); U_h_pad[1:Hout + 1] = U_h
    U_w_pad = np.zeros((Wout + 2, Win), np.float32); U_w_pad[1:Wout + 1] = U_w
    # A_cat[ho, dh*Hin + h] = U_h[ho + dh - 1, h]  (zero rows at the H-pad border)
    A_cat = np.concatenate([U_h_pad[d:d + Hout] for d in range(3)], axis=1)   # (Hout, 3*Hin)
    # Uw_sh[dw, wo, w] = U_w[wo + dw - 1, w]  (zero rows at the W-pad border)
    Uw_sh = np.stack([U_w_pad[d:d + Wout] for d in range(3)], axis=0)         # (3, Wout, Win)
    # M[dh, w*Cin+ci, wo*Cout+co] = sum_dw Uw_sh[dw, wo, w] * W[dh, dw, ci, co]
    M = jnp.einsum('eow,decy->dwcoy', jnp.asarray(Uw_sh), W.astype(jnp.float32))
    M = M.reshape(3, WCi, WCo)
    # M_cat[w*Cin+ci, dh*WCo + wo*Cout+co] -> lane-concatenated taps for the first matmul
    M_cat = jnp.transpose(M, (1, 0, 2)).reshape(WCi, 3 * WCo)

    A_cat = jnp.asarray(A_cat, jnp.bfloat16)         # bilinear weights are exact in bf16
    M_cat = M_cat.astype(jnp.bfloat16)
    brow = jnp.tile(b.astype(jnp.float32), Wout).reshape(1, WCo)     # bias, lane-replicated

    conv_out, stats = pl.pallas_call(
        upconv_kernel,
        out_shape=(jax.ShapeDtypeStruct((N, Hout, WCo), jnp.float32),
                   jax.ShapeDtypeStruct((N, 2, WCo), jnp.float32)),
        grid=(N,),
        in_specs=[
            pl.BlockSpec((1, Hin, WCi), lambda n: (n, 0, 0)),
            pl.BlockSpec((Hout, 3 * Hin), lambda n: (0, 0)),
            pl.BlockSpec((WCi, 3 * WCo), lambda n: (0, 0)),
            pl.BlockSpec((1, WCo), lambda n: (0, 0)),
        ],
        out_specs=(
            pl.BlockSpec((1, Hout, WCo), lambda n: (n, 0, 0)),
            pl.BlockSpec((1, 2, WCo), lambda n: (n, 0, 0)),
        ),
        compiler_params=pltpu.CompilerParams(dimension_semantics=("parallel",)),
    )(x_slab, A_cat, M_cat, brow)

    # BatchNorm2d training-mode statistics (biased, over N,H,W), finished from the lane-dense
    # per-sample partial sums emitted by the conv kernel (no extra HBM read of conv_out).
    # TODO(synk): running_mean/running_var updates are a stateful training side effect with no
    #             forward-output impact; not emitted.
    count = N * Hout * Wout
    s = stats.reshape(N, 2, Wout, Cout).sum(axis=(0, 2))             # (2, Cout)
    mean = s[0] / count
    var = jnp.maximum(s[1] / count - mean * mean, 0.0)
    inv = gamma.astype(jnp.float32) / jnp.sqrt(var + eps)
    scale_row = jnp.tile(inv, Wout).reshape(1, WCo)
    shift_row = jnp.tile(beta.astype(jnp.float32) - mean * inv, Wout).reshape(1, WCo)

    # ---- coarse-grained BN+ReLU pass: (N*Hout, WCo) rows, big tiles, in-place on conv_out ----
    rows = N * Hout
    tr = rows if rows <= 512 else (512 if rows % 512 == 0 else Hout)
    conv_flat = conv_out.reshape(rows, WCo)
    out_flat = pl.pallas_call(
        bn_relu_kernel,
        out_shape=jax.ShapeDtypeStruct((rows, WCo), jnp.float32),
        grid=(rows // tr,),
        in_specs=[
            pl.BlockSpec((tr, WCo), lambda i: (i, 0)),
            pl.BlockSpec((1, WCo), lambda i: (0, 0)),
            pl.BlockSpec((1, WCo), lambda i: (0, 0)),
        ],
        out_specs=pl.BlockSpec((tr, WCo), lambda i: (i, 0)),
        input_output_aliases={0: 0},          # conv_out is dead after this pass -> reuse buffer
        compiler_params=pltpu.CompilerParams(dimension_semantics=("parallel",)),
    )(conv_flat, scale_row, shift_row)

    out = out_flat.reshape(N, Hout, Wout, Cout)
    return jnp.transpose(out, (0, 3, 1, 2))                          # NHWC -> NCHW


def ref_forward(x_nchw, W, b, gamma, beta, eps=1e-5):
    """Pure-JAX f32 reference with identical semantics (for verification)."""
    x = jnp.transpose(x_nchw, (0, 2, 3, 1)).astype(jnp.float32)
    U_h = jnp.asarray(_bilinear_matrix(x.shape[1]))
    U_w = jnp.asarray(_bilinear_matrix(x.shape[2]))
    up = jnp.einsum('oh,nhwc->nowc', U_h, x)
    up = jnp.einsum('vw,nowc->novc', U_w, up)
    y = jax.lax.conv_general_dilated(
        up, W, window_strides=(1, 1), padding=[(1, 1), (1, 1)],
        dimension_numbers=('NHWC', 'HWIO', 'NHWC')) + b
    mean = y.mean((0, 1, 2))
    var = y.var((0, 1, 2))
    yhat = (y - mean) / jnp.sqrt(var + eps)
    out = jnp.maximum(yhat * gamma + beta, 0.0)
    return jnp.transpose(out, (0, 3, 1, 2))


if __name__ == "__main__":
    key = jax.random.PRNGKey(0)
    k1, k2, k3, k4, k5 = jax.random.split(key, 5)

    N, Cin, H, Wsp = 2, 4, 16, 16
    Cout = 8

    x = jax.random.normal(k1, (N, Cin, H, Wsp), jnp.float32)
    W = jax.random.normal(k2, (3, 3, Cin, Cout), jnp.float32) * 0.1      # HWIO
    b = jax.random.normal(k3, (Cout,), jnp.float32) * 0.1
    gamma = 1.0 + 0.1 * jax.random.normal(k4, (Cout,), jnp.float32)
    beta = 0.1 * jax.random.normal(k5, (Cout,), jnp.float32)

    fwd = jax.jit(up_block_forward)
    out = jax.block_until_ready(fwd(x, W, b, gamma, beta))
    ref = jax.block_until_ready(ref_forward(x, W, b, gamma, beta))
    # bf16 MXU inputs (per perf review) -> tolerance loosened from 1e-3 to 3e-2 vs f32 reference.
    np.testing.assert_allclose(np.asarray(out), np.asarray(ref), rtol=3e-2, atol=3e-2)
    print("KERNEL_OK")
</pallas_src>

<mosaic_0001>
module attributes {stable_mosaic.version = 11 : i64} {
  func.func @upconv_kernel(%arg0: i32, %arg1: memref<1x16x64xbf16, #tpu.memory_space<vmem>>, %arg2: memref<32x48xbf16, #tpu.memory_space<vmem>>, %arg3: memref<64x768xbf16, #tpu.memory_space<vmem>>, %arg4: memref<1x256xf32, #tpu.memory_space<vmem>>, %arg5: memref<1x32x256xf32, #tpu.memory_space<vmem>>, %arg6: memref<1x2x256xf32, #tpu.memory_space<vmem>>) attributes {dimension_semantics = [#tpu.dimension_semantics<parallel>], iteration_bounds = array<i64: 2>, scalar_prefetch = 0 : i64, scratch_operands = 0 : i64, tpu.core_type = #tpu.core_type<tc>, window_params = [{transform_indices = @transform_0, window_bounds = array<i64: 1, 16, 64>}, {pipeline_mode = #tpu.pipeline_mode<synchronous>, transform_indices = @transform_1, window_bounds = array<i64: 32, 48>}, {pipeline_mode = #tpu.pipeline_mode<synchronous>, transform_indices = @transform_2, window_bounds = array<i64: 64, 768>}, {pipeline_mode = #tpu.pipeline_mode<synchronous>, transform_indices = @transform_3, window_bounds = array<i64: 1, 256>}, {transform_indices = @transform_4, window_bounds = array<i64: 1, 32, 256>}, {transform_indices = @transform_5, window_bounds = array<i64: 1, 2, 256>}]} {
    %c0 = arith.constant 0 : index
    %c0_0 = arith.constant 0 : index
    %c0_1 = arith.constant 0 : index
    %0 = vector.load %arg1[%c0, %c0_0, %c0_1] : memref<1x16x64xbf16, #tpu.memory_space<vmem>>, vector<1x16x64xbf16>
    %1 = vector.shape_cast %0 : vector<1x16x64xbf16> to vector<16x64xbf16>
    %c0_2 = arith.constant 0 : index
    %c0_3 = arith.constant 0 : index
    %2 = vector.load %arg3[%c0_2, %c0_3] : memref<64x768xbf16, #tpu.memory_space<vmem>>, vector<64x768xbf16>
    %cst = arith.constant dense<0.000000e+00> : vector<16x768xf32>
    %3 = tpu.matmul %1, %2, %cst {dimension_numbers = #tpu.dot_dimension_numbers<[1], [0], [0], [1], [0, 0, 1, 1], [], []>} : vector<16x64xbf16>, vector<64x768xbf16>, vector<16x768xf32> -> vector<16x768xf32>
    %4 = vector.extract_strided_slice %3 {offsets = [0, 0], sizes = [16, 256], strides = [1, 1]} : vector<16x768xf32> to vector<16x256xf32>
    %5 = vector.extract_strided_slice %3 {offsets = [0, 256], sizes = [16, 256], strides = [1, 1]} : vector<16x768xf32> to vector<16x256xf32>
    %6 = vector.extract_strided_slice %3 {offsets = [0, 512], sizes = [16, 256], strides = [1, 1]} : vector<16x768xf32> to vector<16x256xf32>
    %7 = tpu.concatenate %4, %5, %6 in 0 : vector<16x256xf32>, vector<16x256xf32>, vector<16x256xf32> -> vector<48x256xf32>
    %8 = arith.truncf %7 : vector<48x256xf32> to vector<48x256xbf16>
    %c0_4 = arith.constant 0 : index
    %c0_5 = arith.constant 0 : index
    %9 = vector.load %arg2[%c0_4, %c0_5] : memref<32x48xbf16, #tpu.memory_space<vmem>>, vector<32x48xbf16>
    %cst_6 = arith.constant dense<0.000000e+00> : vector<32x256xf32>
    %10 = tpu.matmul %9, %8, %cst_6 {dimension_numbers = #tpu.dot_dimension_numbers<[1], [0], [0], [1], [0, 0, 1, 1], [], []>} : vector<32x48xbf16>, vector<48x256xbf16>, vector<32x256xf32> -> vector<32x256xf32>
    %c0_7 = arith.constant 0 : index
    %c0_8 = arith.constant 0 : index
    %11 = vector.load %arg4[%c0_7, %c0_8] : memref<1x256xf32, #tpu.memory_space<vmem>>, vector<1x256xf32>
    %12 = vector.broadcast %11 : vector<1x256xf32> to vector<32x256xf32>
    %13 = arith.addf %10, %12 : vector<32x256xf32>
    %c0_9 = arith.constant 0 : index
    %c0_10 = arith.constant 0 : index
    %c0_11 = arith.constant 0 : index
    %14 = vector.load %arg5[%c0_9, %c0_10, %c0_11] : memref<1x32x256xf32, #tpu.memory_space<vmem>>, vector<1x32x256xf32>
    %15 = vector.shape_cast %14 : vector<1x32x256xf32> to vector<32x256xf32>
    %16 = vector.shape_cast %13 : vector<32x256xf32> to vector<1x32x256xf32>
    tpu.vector_store %arg5[%c0_9, %c0_10, %c0_11], %16 {strides = array<i32>} : memref<1x32x256xf32, #tpu.memory_space<vmem>>, vector<1x32x256xf32>,
    %cst_12 = arith.constant dense<0.000000e+00> : vector<256xf32>
    %17 = vector.multi_reduction <add>, %13, %cst_12 [0] : vector<32x256xf32> to vector<256xf32>
    %18 = vector.shape_cast %17 : vector<256xf32> to vector<1x256xf32>
    %c0_13 = arith.constant 0 : index
    %c0_14 = arith.constant 0 : index
    %c0_15 = arith.constant 0 : index
    %19 = vector.load %arg6[%c0_13, %c0_14, %c0_15] : memref<1x2x256xf32, #tpu.memory_space<vmem>>, vector<1x1x256xf32>
    %20 = vector.shape_cast %19 : vector<1x1x256xf32> to vector<1x256xf32>
    %21 = vector.shape_cast %18 : vector<1x256xf32> to vector<1x1x256xf32>
    tpu.vector_store %arg6[%c0_13, %c0_14, %c0_15], %21 {strides = array<i32>} : memref<1x2x256xf32, #tpu.memory_space<vmem>>, vector<1x1x256xf32>,
    %22 = arith.mulf %13, %13 : vector<32x256xf32>
    %cst_16 = arith.constant dense<0.000000e+00> : vector<256xf32>
    %23 = vector.multi_reduction <add>, %22, %cst_16 [0] : vector<32x256xf32> to vector<256xf32>
    %24 = vector.shape_cast %23 : vector<256xf32> to vector<1x256xf32>
    %c0_17 = arith.constant 0 : index
    %c1 = arith.constant 1 : index
    %c0_18 = arith.constant 0 : index
    %25 = vector.load %arg6[%c0_17, %c1, %c0_18] : memref<1x2x256xf32, #tpu.memory_space<vmem>>, vector<1x1x256xf32>
    %26 = vector.shape_cast %25 : vector<1x1x256xf32> to vector<1x256xf32>
    %27 = vector.shape_cast %24 : vector<1x256xf32> to vector<1x1x256xf32>
    tpu.vector_store %arg6[%c0_17, %c1, %c0_18], %27 {strides = array<i32>} : memref<1x2x256xf32, #tpu.memory_space<vmem>>, vector<1x1x256xf32>,
    return
  }
  func.func @transform_0(%arg0: i32) -> (i32, i32, i32) {
    %c0_i32 = arith.constant 0 : i32
    %c0_i32_0 = arith.constant 0 : i32
    %c0_i32_1 = arith.constant 0 : i32
    return %arg0, %c0_i32, %c0_i32_0 : i32, i32, i32
  }
  func.func @transform_1(%arg0: i32) -> (i32, i32) {
    %c0_i32 = arith.constant 0 : i32
    %c0_i32_0 = arith.constant 0 : i32
    %c0_i32_1 = arith.constant 0 : i32
    return %c0_i32, %c0_i32_0 : i32, i32
  }
  func.func @transform_2(%arg0: i32) -> (i32, i32) {
    %c0_i32 = arith.constant 0 : i32
    %c0_i32_0 = arith.constant 0 : i32
    %c0_i32_1 = arith.constant 0 : i32
    return %c0_i32, %c0_i32_0 : i32, i32
  }
  func.func @transform_3(%arg0: i32) -> (i32, i32) {
    %c0_i32 = arith.constant 0 : i32
    %c0_i32_0 = arith.constant 0 : i32
    %c0_i32_1 = arith.constant 0 : i32
    return %c0_i32, %c0_i32_0 : i32, i32
  }
  func.func @transform_4(%arg0: i32) -> (i32, i32, i32) {
    %c0_i32 = arith.constant 0 : i32
    %c0_i32_0 = arith.constant 0 : i32
    %c0_i32_1 = arith.constant 0 : i32
    return %arg0, %c0_i32, %c0_i32_0 : i32, i32, i32
  }
  func.func @transform_5(%arg0: i32) -> (i32, i32, i32) {
    %c0_i32 = arith.constant 0 : i32
    %c0_i32_0 = arith.constant 0 : i32
    %c0_i32_1 = arith.constant 0 : i32
    return %arg0, %c0_i32, %c0_i32_0 : i32, i32, i32
  }
}

module attributes {stable_mosaic.version = 11 : i64} {
  func.func @bn_relu_kernel(%arg0: i32, %arg1: memref<64x256xf32, #tpu.memory_space<vmem>>, %arg2: memref<1x256xf32, #tpu.memory_space<vmem>>, %arg3: memref<1x256xf32, #tpu.memory_space<vmem>>, %arg4: memref<64x256xf32, #tpu.memory_space<vmem>>) attributes {dimension_semantics = [#tpu.dimension_semantics<parallel>], iteration_bounds = array<i64: 1>, scalar_prefetch = 0 : i64, scratch_operands = 0 : i64, tpu.core_type = #tpu.core_type<tc>, window_params = [{transform_indices = @transform_0, window_bounds = array<i64: 64, 256>}, {pipeline_mode = #tpu.pipeline_mode<synchronous>, transform_indices = @transform_1, window_bounds = array<i64: 1, 256>}, {pipeline_mode = #tpu.pipeline_mode<synchronous>, transform_indices = @transform_2, window_bounds = array<i64: 1, 256>}, {transform_indices = @transform_3, window_bounds = array<i64: 64, 256>}]} {
    %c0 = arith.constant 0 : index
    %c0_0 = arith.constant 0 : index
    %0 = vector.load %arg1[%c0, %c0_0] : memref<64x256xf32, #tpu.memory_space<vmem>>, vector<64x256xf32>
    %c0_1 = arith.constant 0 : index
    %c0_2 = arith.constant 0 : index
    %1 = vector.load %arg2[%c0_1, %c0_2] : memref<1x256xf32, #tpu.memory_space<vmem>>, vector<1x256xf32>
    %2 = vector.broadcast %1 : vector<1x256xf32> to vector<64x256xf32>
    %3 = arith.mulf %0, %2 : vector<64x256xf32>
    %c0_3 = arith.constant 0 : index
    %c0_4 = arith.constant 0 : index
    %4 = vector.load %arg3[%c0_3, %c0_4] : memref<1x256xf32, #tpu.memory_space<vmem>>, vector<1x256xf32>
    %5 = vector.broadcast %4 : vector<1x256xf32> to vector<64x256xf32>
    %6 = arith.addf %3, %5 : vector<64x256xf32>
    %cst = arith.constant 0.000000e+00 : f32
    %7 = vector.broadcast %cst : f32 to vector<64x256xf32>
    %8 = arith.maximumf %6, %7 : vector<64x256xf32>
    %c0_5 = arith.constant 0 : index
    %c0_6 = arith.constant 0 : index
    %9 = vector.load %arg4[%c0_5, %c0_6] : memref<64x256xf32, #tpu.memory_space<vmem>>, vector<64x256xf32>
    tpu.vector_store %arg4[%c0_5, %c0_6], %8 {strides = array<i32>} : memref<64x256xf32, #tpu.memory_space<vmem>>, vector<64x256xf32>,
    return
  }
  func.func @transform_0(%arg0: i32) -> (i32, i32) {
    %c0_i32 = arith.constant 0 : i32
    %c0_i32_0 = arith.constant 0 : i32
    return %arg0, %c0_i32 : i32, i32
  }
  func.func @transform_1(%arg0: i32) -> (i32, i32) {
    %c0_i32 = arith.constant 0 : i32
    %c0_i32_0 = arith.constant 0 : i32
    %c0_i32_1 = arith.constant 0 : i32
    return %c0_i32, %c0_i32_0 : i32, i32
  }
  func.func @transform_2(%arg0: i32) -> (i32, i32) {
    %c0_i32 = arith.constant 0 : i32
    %c0_i32_0 = arith.constant 0 : i32
    %c0_i32_1 = arith.constant 0 : i32
    return %c0_i32, %c0_i32_0 : i32, i32
  }
  func.func @transform_3(%arg0: i32) -> (i32, i32) {
    %c0_i32 = arith.constant 0 : i32
    %c0_i32_0 = arith.constant 0 : i32
    return %arg0, %c0_i32 : i32, i32
  }
}

</mosaic_0001>

<llo_original>
// kernel: tile.18
$region0: #{tile.18}
  #allocation0 [shape = 's32[1]{0}', space=sflag, size = 0x4, scoped, tag = 'scoped memory for tile.18']
  %s0 = inlined_call_operand.vmem [shape: f32[8], index: 0, kind: input, shape index: {}]
  %s1 = inlined_call_operand.vmem [shape: f32[32,8], index: 1, kind: output, shape index: {}]
  // Predicated region
  $region2: #{tile.18} parent=0 // pred_check
    _
  $region3: #{tile.18} parent=0 // pred_check_branch
    %3 = sbr.rel (0) target = $region5
  $region4: #{tile.18} parent=0 // pred_region
    _
  $region5: #{tile.18} parent=0 // pred_fallthru
    _
  %v4 = vld [vmem:[%s0] ss:$0 sm:$0xff]
  %5 = vst [vmem:[%s1] sm:$0xff] %v4
  %s6 = scalar_lea.vmem %s1, 8
  %7 = vst [vmem:[%s6] sm:$0xff] %v4
  %s8 = scalar_lea.vmem %s1, 16
  %9 = vst [vmem:[%s8] sm:$0xff] %v4
  %s10 = scalar_lea.vmem %s1, 24
  %11 = vst [vmem:[%s10] sm:$0xff] %v4

// kernel: tile.19
$region0: #{tile.19}
  %s0 = inlined_call_operand.vmem [shape: f32[32,8], index: 0, kind: input, shape index: {}]
  %s1 = inlined_call_operand.vmem [shape: f32[1,256], index: 1, kind: output, shape index: {}]
  $region1: #{tile.19} parent=0
    #allocation0 [shape = 'u8[8192]{0}', space=vmem, size = 0x2000, scoped, tag = 'scoped mem for output reshape']
    %s2 = smov 3
    %v3 = vld [vmem:[%s0] ss:$16 sm:%s2]
    %vm4 = vcmask 64512
    %5 = vst.msk [vmem:[#allocation0] ss:$8 sm:$0x3] %vm4, %v3
    %s6 = scalar_lea.vmem %s0, 15
    %s7 = smov 3
    %v8 = vld [vmem:[%s6] ss:$16 sm:%s7]
    %9 = vrot.lane.b32.xlu0 %v8, 120
    %v10 = vpop.permute.xlu0 %9
    %vm11 = vcmask 1048512
    %12 = vst.msk [vmem:[#allocation0] ss:$8 sm:$0x3] %vm11, %v10
    %s13 = scalar_lea.vmem %s0, 14
    %s14 = smov 3
    %v15 = vld [vmem:[%s13] ss:$16 sm:%s14]
    %16 = vrot.lane.b32.xlu0 %v15, 112
    %v17 = vpop.permute.xlu0 %16
    %vm18 = vcmask 982912
    %19 = vst.msk [vmem:[#allocation0] ss:$8 sm:$0x3] %vm18, %v17
    %s20 = scalar_lea.vmem %s0, 13
    %s21 = smov 3
    %v22 = vld [vmem:[%s20] ss:$16 sm:%s21]
    %23 = vrot.lane.b32.xlu0 %v22, 104
    %v24 = vpop.permute.xlu0 %23
    %vm25 = vcmask 917312
    %26 = vst.msk [vmem:[#allocation0] ss:$8 sm:$0x3] %vm25, %v24
    %s27 = scalar_lea.vmem %s0, 12
    %s28 = smov 3
    %v29 = vld [vmem:[%s27] ss:$16 sm:%s28]
    %30 = vrot.lane.b32.xlu0 %v29, 96
    %v31 = vpop.permute.xlu0 %30
    %vm32 = vcmask 851712
    %33 = vst.msk [vmem:[#allocation0] ss:$8 sm:$0x3] %vm32, %v31
    %s34 = scalar_lea.vmem %s0, 11
    %s35 = smov 3
    %v36 = vld [vmem:[%s34] ss:$16 sm:%s35]
    %37 = vrot.lane.b32.xlu0 %v36, 88
    %v38 = vpop.permute.xlu0 %37
    %vm39 = vcmask 786112
    %40 = vst.msk [vmem:[#allocation0] ss:$8 sm:$0x3] %vm39, %v38
    %s41 = scalar_lea.vmem %s0, 10
    %s42 = smov 3
    %v43 = vld [vmem:[%s41] ss:$16 sm:%s42]
    %44 = vrot.lane.b32.xlu0 %v43, 80
    %v45 = vpop.permute.xlu0 %44
    %vm46 = vcmask 720512
    %47 = vst.msk [vmem:[#allocation0] ss:$8 sm:$0x3] %vm46, %v45
    %s48 = scalar_lea.vmem %s0, 9
    %s49 = smov 3
    %v50 = vld [vmem:[%s48] ss:$16 sm:%s49]
    %51 = vrot.lane.b32.xlu0 %v50, 72
    %v52 = vpop.permute.xlu0 %51
    %vm53 = vcmask 654912
    %54 = vst.msk [vmem:[#allocation0] ss:$8 sm:$0x3] %vm53, %v52
    %s55 = scalar_lea.vmem %s0, 8
    %s56 = smov 3
    %v57 = vld [vmem:[%s55] ss:$16 sm:%s56]
    %58 = vrot.lane.b32.xlu0 %v57, 64
    %v59 = vpop.permute.xlu0 %58
    %vm60 = vcmask 589312
    %61 = vst.msk [vmem:[#allocation0] ss:$8 sm:$0x3] %vm60, %v59
    %s62 = scalar_lea.vmem %s0, 7
    %s63 = smov 3
    %v64 = vld [vmem:[%s62] ss:$16 sm:%s63]
    %65 = vrot.lane.b32.xlu0 %v64, 56
    %v66 = vpop.permute.xlu0 %65
    %vm67 = vcmask 523712
    %68 = vst.msk [vmem:[#allocation0] ss:$8 sm:$0x3] %vm67, %v66
    %s69 = scalar_lea.vmem %s0, 6
    %s70 = smov 3
    %v71 = vld [vmem:[%s69] ss:$16 sm:%s70]
    %72 = vrot.lane.b32.xlu0 %v71, 48
    %v73 = vpop.permute.xlu0 %72
    %vm74 = vcmask 458112
    %75 = vst.msk [vmem:[#allocation0] ss:$8 sm:$0x3] %vm74, %v73
    %s76 = scalar_lea.vmem %s0, 5
    %s77 = smov 3
    %v78 = vld [vmem:[%s76] ss:$16 sm:%s77]
    %79 = vrot.lane.b32.xlu0 %v78, 40
    %v80 = vpop.permute.xlu0 %79
    %vm81 = vcmask 392512
    %82 = vst.msk [vmem:[#allocation0] ss:$8 sm:$0x3] %vm81, %v80
    %s83 = scalar_lea.vmem %s0, 4
    %s84 = smov 3
    %v85 = vld [vmem:[%s83] ss:$16 sm:%s84]
    %86 = vrot.lane.b32.xlu0 %v85, 32
    %v87 = vpop.permute.xlu0 %86
    %vm88 = vcmask 326912
    %89 = vst.msk [vmem:[#allocation0] ss:$8 sm:$0x3] %vm88, %v87
    %s90 = scalar_lea.vmem %s0, 3
    %s91 = smov 3
    %v92 = vld [vmem:[%s90] ss:$16 sm:%s91]
    %93 = vrot.lane.b32.xlu0 %v92, 24
    %v94 = vpop.permute.xlu0 %93
    %vm95 = vcmask 261312
    %96 = vst.msk [vmem:[#allocation0] ss:$8 sm:$0x3] %vm95, %v94
    %s97 = scalar_lea.vmem %s0, 2
    %s98 = smov 3
    %v99 = vld [vmem:[%s97] ss:$16 sm:%s98]
    %100 = vrot.lane.b32.xlu0 %v99, 16
    %v101 = vpop.permute.xlu0 %100
    %vm102 = vcmask 195712
    %103 = vst.msk [vmem:[#allocation0] ss:$8 sm:$0x3] %vm102, %v101
    %s104 = scalar_lea.vmem %s0, 1
    %s105 = smov 3
    %v106 = vld [vmem:[%s104] ss:$16 sm:%s105]
    %107 = vrot.lane.b32.xlu0 %v106, 8
    %v108 = vpop.permute.xlu0 %107
    %vm109 = vcmask 130112
    %110 = vst.msk [vmem:[#allocation0] ss:$8 sm:$0x3] %vm109, %v108
    %s112 = sshll.u32 1, 1
    %s113 = ssub.s32 %s112, 1
    %v115 = vld [vmem:[#allocation0] sm:%s113]
    %s116 = sshll.u32 1, 1
    %s117 = ssub.s32 %s116, 1
    %118 = vst [vmem:[%s1] sm:%s117] %v115
    %s119 = scalar_lea.vmem [#allocation0], 8
    %v120 = vld [vmem:[%s119] sm:%s113]
    %s121 = sshll.u32 1, 1
    %s122 = ssub.s32 %s121, 1
    %s123 = scalar_lea.vmem %s1, 1
    %124 = vst [vmem:[%s123] sm:%s122] %v120

// kernel: up_block_forward.3
$region0: #{up_block_forward.3}
  #allocation0 [shape = 'u32[]', space=smem, size = 0x4, offset = 0x4, fixed_abs, tag = 'smem constant byte address 0x4 - core index']
  #allocation1 [shape = 'u32[144,128]{1,0:T(1,128)}', space=vmem, size = 0x12000, scoped, tag = 'internal scratch']
  %s0 = inlined_call_operand.vmem [shape: f32[64,256], index: 0, kind: input, shape index: {}, may-alias: {0,3}]
  %s1 = inlined_call_operand.vmem [shape: f32[1,256], index: 1, kind: input, shape index: {}]
  %s2 = inlined_call_operand.vmem [shape: f32[1,256], index: 2, kind: input, shape index: {}]
  %s3 = inlined_call_operand.vmem [shape: f32[64,256], index: 3, kind: output, shape index: {}, may-alias: {0,3}]
  %s4 = sld [smem:[#allocation0]]
  $region22: #{up_block_forward.3} parent=0
    _
  %s6 = ssub.s32 1, %s4
  %s7 = scalar_select 0, %s6, %s4
  // Predicated region
  $region2: #{up_block_forward.3} parent=0 // pred_check
    _
  $region3: #{up_block_forward.3} parent=0 // pred_check_branch
    %9 = sbr.rel (0) target = $region5
  $region4: #{up_block_forward.3} parent=0 // pred_region
    _
  $region5: #{up_block_forward.3} parent=0 // pred_fallthru
    _
  // Predicated region
  $region6: #{up_block_forward.3} parent=0 // pred_check
    _
  $region7: #{up_block_forward.3} parent=0 // pred_check_branch
    %11 = sbr.rel (0) target = $region9
  $region8: #{up_block_forward.3} parent=0 // pred_region
    _
  $region9: #{up_block_forward.3} parent=0 // pred_fallthru
    _
  // Predicated region
  $region10: #{up_block_forward.3} parent=0 // pred_check
    _
  $region11: #{up_block_forward.3} parent=0 // pred_check_branch
    %13 = sbr.rel (0) target = $region13
  $region12: #{up_block_forward.3} parent=0 // pred_region
    _
  $region13: #{up_block_forward.3} parent=0 // pred_fallthru
    _
  %v14 = vld [vmem:[%s0] sm:$0xff]
  %v15 = vld [vmem:[%s0 + $0x8] sm:$0xff]
  %v16 = vld [vmem:[%s0 + $0x10] sm:$0xff]
  %v17 = vld [vmem:[%s0 + $0x18] sm:$0xff]
  %v18 = vld [vmem:[%s0 + $0x20] sm:$0xff]
  %v19 = vld [vmem:[%s0 + $0x28] sm:$0xff]
  %v20 = vld [vmem:[%s0 + $0x30] sm:$0xff]
  %v21 = vld [vmem:[%s0 + $0x38] sm:$0xff]
  %v22 = vld [vmem:[%s0 + $0x40] sm:$0xff]
  %v23 = vld [vmem:[%s0 + $0x48] sm:$0xff]
  %v24 = vld [vmem:[%s0 + $0x50] sm:$0xff]
  %v25 = vld [vmem:[%s0 + $0x58] sm:$0xff]
  %v26 = vld [vmem:[%s0 + $0x60] sm:$0xff]
  %v27 = vld [vmem:[%s0 + $0x68] sm:$0xff]
  %v28 = vld [vmem:[%s0 + $0x70] sm:$0xff]
  %v29 = vld [vmem:[%s0 + $0x78] sm:$0xff]
  %v30 = vld [vmem:[%s1] sm:$0x3]
  %v32 = vlaneseq
  %v33 = vshrl.u32 %v32, 7
  %v34 = vsub.s32 0, %v33
  %v35 = vrot.slane %v30, %v34
  %v36 = vlaneseq
  %v37 = vshrl.u32 %v36, 7
  %v38 = vsub.s32 1, %v37
  %v39 = vrot.slane %v30, %v38
  %v42 = vmul.f32 %v14, %v35
  %v43 = vmul.f32 %v15, %v39
  %v44 = vmul.f32 %v16, %v35
  %v45 = vmul.f32 %v17, %v39
  %v46 = vmul.f32 %v18, %v35
  %v47 = vmul.f32 %v19, %v39
  %v48 = vmul.f32 %v20, %v35
  %v49 = vmul.f32 %v21, %v39
  %v50 = vmul.f32 %v22, %v35
  %v51 = vmul.f32 %v23, %v39
  %v52 = vmul.f32 %v24, %v35
  %v53 = vmul.f32 %v25, %v39
  %v54 = vmul.f32 %v26, %v35
  %v55 = vmul.f32 %v27, %v39
  %v56 = vmul.f32 %v28, %v35
  %v57 = vmul.f32 %v29, %v39
  %v58 = vld [vmem:[%s2] sm:$0x3]
  %v60 = vlaneseq
  %v61 = vshrl.u32 %v60, 7
  %v62 = vsub.s32 0, %v61
  %v63 = vrot.slane %v58, %v62
  %v64 = vlaneseq
  %v65 = vshrl.u32 %v64, 7
  %v66 = vsub.s32 1, %v65
  %v67 = vrot.slane %v58, %v66
  %v70 = vadd.f32 %v42, %v63
  %v71 = vadd.f32 %v43, %v67
  %v72 = vadd.f32 %v44, %v63
  %v73 = vadd.f32 %v45, %v67
  %v74 = vadd.f32 %v46, %v63
  %v75 = vadd.f32 %v47, %v67
  %v76 = vadd.f32 %v48, %v63
  %v77 = vadd.f32 %v49, %v67
  %v78 = vadd.f32 %v50, %v63
  %v79 = vadd.f32 %v51, %v67
  %v80 = vadd.f32 %v52, %v63
  %v81 = vadd.f32 %v53, %v67
  %v82 = vadd.f32 %v54, %v63
  %v83 = vadd.f32 %v55, %v67
  %v84 = vadd.f32 %v56, %v63
  %v85 = vadd.f32 %v57, %v67
  %v86 = vmax.f32 %v70, 0.0
  %v87 = vmax.f32 %v71, 0.0
  %v88 = vmax.f32 %v72, 0.0
  %v89 = vmax.f32 %v73, 0.0
  %v90 = vmax.f32 %v74, 0.0
  %v91 = vmax.f32 %v75, 0.0
  %v92 = vmax.f32 %v76, 0.0
  %v93 = vmax.f32 %v77, 0.0
  %v94 = vmax.f32 %v78, 0.0
  %v95 = vmax.f32 %v79, 0.0
  %v96 = vmax.f32 %v80, 0.0
  %v97 = vmax.f32 %v81, 0.0
  %v98 = vmax.f32 %v82, 0.0
  %v99 = vmax.f32 %v83, 0.0
  %v100 = vmax.f32 %v84, 0.0
  %v101 = vmax.f32 %v85, 0.0
  %102 = vst [vmem:[%s3] sm:$0xff] %v86
  %103 = vst [vmem:[%s3 + $0x8] sm:$0xff] %v87
  %104 = vst [vmem:[%s3 + $0x10] sm:$0xff] %v88
  %105 = vst [vmem:[%s3 + $0x18] sm:$0xff] %v89
  %106 = vst [vmem:[%s3 + $0x20] sm:$0xff] %v90
  %107 = vst [vmem:[%s3 + $0x28] sm:$0xff] %v91
  %108 = vst [vmem:[%s3 + $0x30] sm:$0xff] %v92
  %109 = vst [vmem:[%s3 + $0x38] sm:$0xff] %v93
  %110 = vst [vmem:[%s3 + $0x40] sm:$0xff] %v94
  %111 = vst [vmem:[%s3 + $0x48] sm:$0xff] %v95
  %112 = vst [vmem:[%s3 + $0x50] sm:$0xff] %v96
  %113 = vst [vmem:[%s3 + $0x58] sm:$0xff] %v97
  %114 = vst [vmem:[%s3 + $0x60] sm:$0xff] %v98
  %115 = vst [vmem:[%s3 + $0x68] sm:$0xff] %v99
  %116 = vst [vmem:[%s3 + $0x70] sm:$0xff] %v100
  %117 = vst [vmem:[%s3 + $0x78] sm:$0xff] %v101
  // Predicated region
  $region14: #{up_block_forward.3} parent=0 // pred_check
    _
  $region15: #{up_block_forward.3} parent=0 // pred_check_branch
    %119 = sbr.rel (0) target = $region17
  $region16: #{up_block_forward.3} parent=0 // pred_region
    _
  $region17: #{up_block_forward.3} parent=0 // pred_fallthru
    _
  // Predicated region
  $region18: #{up_block_forward.3} parent=0 // pred_check
    _
  $region19: #{up_block_forward.3} parent=0 // pred_check_branch
    %121 = sbr.rel (0) target = $region21
  $region20: #{up_block_forward.3} parent=0 // pred_region
    _
  $region21: #{up_block_forward.3} parent=0 // pred_fallthru
    _

// kernel: up_block_forward.2
$region0: #{up_block_forward.2}
  #allocation0 [shape = 'u32[]', space=smem, size = 0x4, offset = 0x4, fixed_abs, tag = 'smem constant byte address 0x4 - core index']
  #allocation1 [shape = 'u32[144,128]{1,0:T(1,128)}', space=vmem, size = 0x12000, scoped, tag = 'internal scratch']
  %s0 = inlined_call_operand.vmem [shape: bf16[2,16,64], index: 0, kind: input, shape index: {}]
  %s1 = inlined_call_operand.vmem [shape: bf16[32,48], index: 1, kind: input, shape index: {}]
  %s2 = inlined_call_operand.vmem [shape: bf16[64,768], index: 2, kind: input, shape index: {}]
  %s3 = inlined_call_operand.vmem [shape: f32[1,256], index: 3, kind: input, shape index: {}]
  %s4 = inlined_call_operand.vmem [shape: f32[2,32,256], index: 4, kind: output, shape index: {0}]
  %s5 = inlined_call_operand.vmem [shape: f32[2,2,256], index: 5, kind: output, shape index: {1}]
  %6 = xla_tuple %s4, %s5
  %s7 = sld [smem:[#allocation0]]
  $region57: #{up_block_forward.2} parent=0
    _
  %s9 = ssub.s32 1, %s7
  %s10 = scalar_select 0, %s9, %s7
  loop: start=0, step=1, limit=4
  $region2: #{up_block_forward.2} parent=0 // loop_pre_header
    _
  $region3: #{up_block_forward.2} parent=0 // loop_header
    %s12 = sphi 0, %s16
    %p13 = scmp.ge.s32.totalorder %s12, 4
    %s22 = sphi 0, %s24
    %s25 = sphi 0, %s22
    %s26 = sphi 0, %s25
    %s42 = sphi 0, %s26
    %s46 = sphi 0, %s46
    %s48 = sphi 0, %s46
    %s49 = sphi 0, %s48
    %s63 = sphi 0, %s49
    %s67 = sphi 0, %s67
    %s69 = sphi 0, %s67
    %s70 = sphi 0, %s69
    %s84 = sphi 0, %s70
    %s88 = sphi 0, %s88
    %s90 = sphi 0, %s88
    %s91 = sphi 0, %s90
    %s105 = sphi 0, %s91
    %s111 = sphi 0, %s113
    %s114 = sphi 0, %s111
    %s115 = sphi 0, %s114
    %s131 = sphi 0, %s115
    %s137 = sphi 0, %s139
    %s140 = sphi 0, %s137
    %s141 = sphi 0, %s140
    %s157 = sphi 0, %s141
  $region4: #{up_block_forward.2} parent=0 // loop_header_branch
    %15 = sbr.rel (%p13) target = $region8
  $region5: #{up_block_forward.2} parent=0 // loop_body
    %s17 = ssub.s32 %s12, 1
    %s18 = ssub.s32 %s12, 2
    %s19 = sadd.s32 %s12, 1
    %s20 = ssub.s32 %s12, %s19
    %p21 = scmp.eq.s32.totalorder %s20, 0
    %s23 = sadd.s32 %s22, 1
    %s24 = scalar_select %p21, %s22, %s23
    %p27 = pneg %p21
    %p28 = scmp.eq.s32.totalorder %s12, 1
    %p29 = por %p27, %p28
    %p30 = scmp.ne.s32.totalorder %s22, %s25
    %p31 = scmp.eq.s32.totalorder %s12, 0
    %p32 = por %p30, %p31
    %p33 = scmp.ne.s32.totalorder %s22, %s25
    %p34 = scmp.eq.s32.totalorder %s17, 1
    %p35 = por %p33, %p34
    %p36 = scmp.ne.s32.totalorder %s25, %s26
    %p37 = scmp.eq.s32.totalorder %s17, 0
    %p38 = por %p36, %p37
    %p39 = scmp.ne.s32.totalorder %s25, %s26
    %p40 = scmp.eq.s32.totalorder %s18, 1
    %p41 = por %p39, %p40
    %p43 = scmp.ne.s32.totalorder %s26, %s42
    %p44 = scmp.eq.s32.totalorder %s18, 0
    %p45 = por %p43, %p44
    %s47 = sadd.s32 %s46, 1
    %p50 = scmp.eq.s32.totalorder %s12, 1
    %p51 = scmp.ne.s32.totalorder %s46, %s48
    %p52 = scmp.eq.s32.totalorder %s12, 0
    %p53 = por %p51, %p52
    %p54 = scmp.ne.s32.totalorder %s46, %s48
    %p55 = scmp.eq.s32.totalorder %s17, 1
    %p56 = por %p54, %p55
    %p57 = scmp.ne.s32.totalorder %s48, %s49
    %p58 = scmp.eq.s32.totalorder %s17, 0
    %p59 = por %p57, %p58
    %p60 = scmp.ne.s32.totalorder %s48, %s49
    %p61 = scmp.eq.s32.totalorder %s18, 1
    %p62 = por %p60, %p61
    %p64 = scmp.ne.s32.totalorder %s49, %s63
    %p65 = scmp.eq.s32.totalorder %s18, 0
    %p66 = por %p64, %p65
    %s68 = sadd.s32 %s67, 1
    %p71 = scmp.eq.s32.totalorder %s12, 1
    %p72 = scmp.ne.s32.totalorder %s67, %s69
    %p73 = scmp.eq.s32.totalorder %s12, 0
    %p74 = por %p72, %p73
    %p75 = scmp.ne.s32.totalorder %s67, %s69
    %p76 = scmp.eq.s32.totalorder %s17, 1
    %p77 = por %p75, %p76
    %p78 = scmp.ne.s32.totalorder %s69, %s70
    %p79 = scmp.eq.s32.totalorder %s17, 0
    %p80 = por %p78, %p79
    %p81 = scmp.ne.s32.totalorder %s69, %s70
    %p82 = scmp.eq.s32.totalorder %s18, 1
    %p83 = por %p81, %p82
    %p85 = scmp.ne.s32.totalorder %s70, %s84
    %p86 = scmp.eq.s32.totalorder %s18, 0
    %p87 = por %p85, %p86
    %s89 = sadd.s32 %s88, 1
    %p92 = scmp.eq.s32.totalorder %s12, 1
    %p93 = scmp.ne.s32.totalorder %s88, %s90
    %p94 = scmp.eq.s32.totalorder %s12, 0
    %p95 = por %p93, %p94
    %p96 = scmp.ne.s32.totalorder %s88, %s90
    %p97 = scmp.eq.s32.totalorder %s17, 1
    %p98 = por %p96, %p97
    %p99 = scmp.ne.s32.totalorder %s90, %s91
    %p100 = scmp.eq.s32.totalorder %s17, 0
    %p101 = por %p99, %p100
    %p102 = scmp.ne.s32.totalorder %s90, %s91
    %p103 = scmp.eq.s32.totalorder %s18, 1
    %p104 = por %p102, %p103
    %p106 = scmp.ne.s32.totalorder %s91, %s105
    %p107 = scmp.eq.s32.totalorder %s18, 0
    %p108 = por %p106, %p107
    %s109 = ssub.s32 %s12, %s19
    %p110 = scmp.eq.s32.totalorder %s109, 0
    %s112 = sadd.s32 %s111, 1
    %s113 = scalar_select %p110, %s111, %s112
    %p116 = pneg %p110
    %p117 = scmp.eq.s32.totalorder %s12, 1
    %p118 = por %p116, %p117
    %p119 = scmp.ne.s32.totalorder %s111, %s114
    %p120 = scmp.eq.s32.totalorder %s12, 0
    %p121 = por %p119, %p120
    %p122 = scmp.ne.s32.totalorder %s111, %s114
    %p123 = scmp.eq.s32.totalorder %s17, 1
    %p124 = por %p122, %p123
    %p125 = scmp.ne.s32.totalorder %s114, %s115
    %p126 = scmp.eq.s32.totalorder %s17, 0
    %p127 = por %p125, %p126
    %p128 = scmp.ne.s32.totalorder %s114, %s115
    %p129 = scmp.eq.s32.totalorder %s18, 1
    %p130 = por %p128, %p129
    %p132 = scmp.ne.s32.totalorder %s115, %s131
    %p133 = scmp.eq.s32.totalorder %s18, 0
    %p134 = por %p132, %p133
    %s135 = ssub.s32 %s12, %s19
    %p136 = scmp.eq.s32.totalorder %s135, 0
    %s138 = sadd.s32 %s137, 1
    %s139 = scalar_select %p136, %s137, %s138
    %p142 = pneg %p136
    %p143 = scmp.eq.s32.totalorder %s12, 1
    %p144 = por %p142, %p143
    %p145 = scmp.ne.s32.totalorder %s137, %s140
    %p146 = scmp.eq.s32.totalorder %s12, 0
    %p147 = por %p145, %p146
    %p148 = scmp.ne.s32.totalorder %s137, %s140
    %p149 = scmp.eq.s32.totalorder %s17, 1
    %p150 = por %p148, %p149
    %p151 = scmp.ne.s32.totalorder %s140, %s141
    %p152 = scmp.eq.s32.totalorder %s17, 0
    %p153 = por %p151, %p152
    %p154 = scmp.ne.s32.totalorder %s140, %s141
    %p155 = scmp.eq.s32.totalorder %s18, 1
    %p156 = por %p154, %p155
    %p158 = scmp.ne.s32.totalorder %s141, %s157
    %p159 = scmp.eq.s32.totalorder %s18, 0
    %p160 = por %p158, %p159
    %p161 = scmp.le.s32.totalorder 1, %s12
    %p162 = scmp.lt.s32.totalorder %s12, 3
    %p163 = pnand %p161, %p162
    %p164 = pneg %p163
    // Predicated region
    $region9: #{up_block_forward.2} parent=5 // pred_check
      _
    $region10: #{up_block_forward.2} parent=5 // pred_check_branch
      %166 = sbr.rel (%p163) target = $region12
    $region11: #{up_block_forward.2} parent=5 // pred_region
      %s167 = ssub.s32 %s12, 1
      // Predicated region
      $region13: #{up_block_forward.2} parent=11 // pred_check
        %p168 = pneg %p59
      $region14: #{up_block_forward.2} parent=11 // pred_check_branch
        %170 = sbr.rel (%p168) target = $region16
      $region15: #{up_block_forward.2} parent=11 // pred_region
        _
      $region16: #{up_block_forward.2} parent=11 // pred_fallthru
        _
      // Predicated region
      $region17: #{up_block_forward.2} parent=11 // pred_check
        %p171 = pneg %p80
      $region18: #{up_block_forward.2} parent=11 // pred_check_branch
        %173 = sbr.rel (%p171) target = $region20
      $region19: #{up_block_forward.2} parent=11 // pred_region
        _
      $region20: #{up_block_forward.2} parent=11 // pred_fallthru
        _
      // Predicated region
      $region21: #{up_block_forward.2} parent=11 // pred_check
        %p174 = pneg %p101
      $region22: #{up_block_forward.2} parent=11 // pred_check_branch
        %176 = sbr.rel (%p174) target = $region24
      $region23: #{up_block_forward.2} parent=11 // pred_region
        _
      $region24: #{up_block_forward.2} parent=11 // pred_fallthru
        _
    $region12: #{up_block_forward.2} parent=5 // pred_fallthru
      _
    %p177 = scmp.lt.s32.totalorder %s12, 2
    // Predicated region
    $region25: #{up_block_forward.2} parent=5 // pred_check
      %p178 = pneg %p177
    $region26: #{up_block_forward.2} parent=5 // pred_check_branch
      %180 = sbr.rel (%p178) target = $region28
    $region27: #{up_block_forward.2} parent=5 // pred_region
      // Predicated region
      $region29: #{up_block_forward.2} parent=27 // pred_check
        %p181 = pneg %p32
      $region30: #{up_block_forward.2} parent=27 // pred_check_branch
        %183 = sbr.rel (%p181) target = $region32
      $region31: #{up_block_forward.2} parent=27 // pred_region
        %p184 = scmp.lt.s32.totalorder %s12, 1
        %s185 = scalar_select %p184, %s12, 1
        %s186 = smul.addr %s185, 2
        %s187 = smul.addr %s186, 4
        %s188 = scalar_lea.vmem %s0, %s187
      $region32: #{up_block_forward.2} parent=27 // pred_fallthru
        _
    $region28: #{up_block_forward.2} parent=5 // pred_fallthru
      _
    %p189 = scmp.le.s32.totalorder 1, %s12
    %p190 = scmp.lt.s32.totalorder %s12, 3
    %p191 = pnand %p189, %p190
    %p192 = pneg %p191
    // Predicated region
    $region33: #{up_block_forward.2} parent=5 // pred_check
      _
    $region34: #{up_block_forward.2} parent=5 // pred_check_branch
      %194 = sbr.rel (%p191) target = $region36
    $region35: #{up_block_forward.2} parent=5 // pred_region
      %s195 = ssub.s32 %s12, 1
      %p196 = scmp.lt.s32.totalorder %s17, 1
      %s197 = scalar_select %p196, %s17, 1
      %s198 = smul.addr %s197, 2
      %s199 = smul.addr %s198, 4
      %s200 = scalar_lea.vmem %s0, %s199
      %p201 = pneg %p38
      %p202 = pneg %p35
      %p203 = pneg %p59
      %p204 = pneg %p56
      %p205 = pneg %p80
      %p206 = pneg %p77
      %p207 = pneg %p101
      %p208 = pneg %p98
      %p209 = pneg %p127
      %p210 = pneg %p124
      %p211 = scmp.lt.s32.totalorder %s17, 1
      %s212 = scalar_select %p211, %s17, 1
      %s213 = smul.addr %s212, 8
      %s214 = smul.addr %s213, 8
      %s215 = scalar_lea.vmem %s4, %s214
      %p216 = pneg %p153
      %p217 = pneg %p150
      %p218 = scmp.lt.s32.totalorder %s17, 1
      %s219 = scalar_select %p218, %s17, 1
      %s220 = smul.addr %s219, 2
      %s221 = smul.addr %s220, 2
      %s222 = scalar_lea.vmem %s5, %s221
      %p223 = scmp.lt.s32.totalorder %s17, 1
      %s224 = scalar_select %p223, %s17, 1
      %s225 = smul.addr %s224, 2
      %s226 = smul.addr %s225, 4
      %s227 = scalar_lea.vmem %s0, %s226
      %p228 = scmp.lt.s32.totalorder %s17, 1
      %s229 = scalar_select %p228, %s17, 1
      %s230 = smul.addr %s229, 8
      %s231 = smul.addr %s230, 8
      %s232 = scalar_lea.vmem %s4, %s231
      %p233 = scmp.lt.s32.totalorder %s17, 1
      %s234 = scalar_select %p233, %s17, 1
      %s235 = smul.addr %s234, 2
      %s236 = smul.addr %s235, 2
      %s237 = scalar_lea.vmem %s5, %s236
      %v239 = vld [vmem:[%s227] sm:$0xf]
      %v240 = vld [vmem:[%s227 + $0x4] sm:$0xf]
      %v241 = vld [vmem:[%s2] sm:$0xff]
      %v242 = vld [vmem:[%s2 + $0x8] sm:$0xff]
      %v243 = vld [vmem:[%s2 + $0x10] sm:$0xff]
      %v244 = vld [vmem:[%s2 + $0x18] sm:$0xff]
      %v245 = vld [vmem:[%s2 + $0x20] sm:$0xff]
      %v246 = vld [vmem:[%s2 + $0x28] sm:$0xff]
      %v247 = vld [vmem:[%s2 + $0x30] sm:$0xff]
      %v248 = vld [vmem:[%s2 + $0x38] sm:$0xff]
      %v249 = vld [vmem:[%s2 + $0x40] sm:$0xff]
      %v250 = vld [vmem:[%s2 + $0x48] sm:$0xff]
      %v251 = vld [vmem:[%s2 + $0x50] sm:$0xff]
      %v252 = vld [vmem:[%s2 + $0x58] sm:$0xff]
      %v253 = vld [vmem:[%s2 + $0x60] sm:$0xff]
      %v254 = vld [vmem:[%s2 + $0x68] sm:$0xff]
      %v255 = vld [vmem:[%s2 + $0x70] sm:$0xff]
      %v256 = vld [vmem:[%s2 + $0x78] sm:$0xff]
      %v257 = vld [vmem:[%s2 + $0x80] sm:$0xff]
      %v258 = vld [vmem:[%s2 + $0x88] sm:$0xff]
      %v259 = vld [vmem:[%s2 + $0x90] sm:$0xff]
      %v260 = vld [vmem:[%s2 + $0x98] sm:$0xff]
      %v261 = vld [vmem:[%s2 + $0xa0] sm:$0xff]
      %v262 = vld [vmem:[%s2 + $0xa8] sm:$0xff]
      %v263 = vld [vmem:[%s2 + $0xb0] sm:$0xff]
      %v264 = vld [vmem:[%s2 + $0xb8] sm:$0xff]
      %v267 = vunpack.c.l.b16 %v239
      %v268 = vunpack.c.l.b16 %v240
      %v269 = vpack.c.b16 %v268, %v267
      %v294 = vunpack.c.l.b16 %v241
      %v295 = vunpack.c.h.b16 %v241
      %v296 = vunpack.c.l.b16 %v242
      %v297 = vunpack.c.h.b16 %v242
      %v298 = vunpack.c.l.b16 %v243
      %v299 = vunpack.c.h.b16 %v243
      %v300 = vunpack.c.l.b16 %v244
      %v301 = vunpack.c.h.b16 %v244
      %v302 = vunpack.c.l.b16 %v245
      %v303 = vunpack.c.h.b16 %v245
      %v304 = vunpack.c.l.b16 %v246
      %v305 = vunpack.c.h.b16 %v246
      %v306 = vunpack.c.l.b16 %v247
      %v307 = vunpack.c.h.b16 %v247
      %v308 = vunpack.c.l.b16 %v248
      %v309 = vunpack.c.h.b16 %v248
      %v310 = vunpack.c.l.b16 %v249
      %v311 = vunpack.c.h.b16 %v249
      %v312 = vunpack.c.l.b16 %v250
      %v313 = vunpack.c.h.b16 %v250
      %v314 = vunpack.c.l.b16 %v251
      %v315 = vunpack.c.h.b16 %v251
      %v316 = vunpack.c.l.b16 %v252
      %v317 = vunpack.c.h.b16 %v252
      %v318 = vunpack.c.l.b16 %v253
      %v319 = vunpack.c.h.b16 %v253
      %v320 = vunpack.c.l.b16 %v254
      %v321 = vunpack.c.h.b16 %v254
      %v322 = vunpack.c.l.b16 %v255
      %v323 = vunpack.c.h.b16 %v255
      %v324 = vunpack.c.l.b16 %v256
      %v325 = vunpack.c.h.b16 %v256
      %v326 = vunpack.c.l.b16 %v257
      %v327 = vunpack.c.h.b16 %v257
      %v328 = vunpack.c.l.b16 %v258
      %v329 = vunpack.c.h.b16 %v258
      %v330 = vunpack.c.l.b16 %v259
      %v331 = vunpack.c.h.b16 %v259
      %v332 = vunpack.c.l.b16 %v260
      %v333 = vunpack.c.h.b16 %v260
      %v334 = vunpack.c.l.b16 %v261
      %v335 = vunpack.c.h.b16 %v261
      %v336 = vunpack.c.l.b16 %v262
      %v337 = vunpack.c.h.b16 %v262
      %v338 = vunpack.c.l.b16 %v263
      %v339 = vunpack.c.h.b16 %v263
      %v340 = vunpack.c.l.b16 %v264
      %v341 = vunpack.c.h.b16 %v264
      %v342 = vpack.c.b16 %v300, %v294
      %v343 = vpack.c.b16 %v301, %v295
      %v344 = vpack.c.b16 %v302, %v296
      %v345 = vpack.c.b16 %v303, %v297
      %v346 = vpack.c.b16 %v304, %v298
      %v347 = vpack.c.b16 %v305, %v299
      %v348 = vpack.c.b16 %v312, %v306
      %v349 = vpack.c.b16 %v313, %v307
      %v350 = vpack.c.b16 %v314, %v308
      %v351 = vpack.c.b16 %v315, %v309
      %v352 = vpack.c.b16 %v316, %v310
      %v353 = vpack.c.b16 %v317, %v311
      %v354 = vpack.c.b16 %v324, %v318
      %v355 = vpack.c.b16 %v325, %v319
      %v356 = vpack.c.b16 %v326, %v320
      %v357 = vpack.c.b16 %v327, %v321
      %v358 = vpack.c.b16 %v328, %v322
      %v359 = vpack.c.b16 %v329, %v323
      %v360 = vpack.c.b16 %v336, %v330
      %v361 = vpack.c.b16 %v337, %v331
      %v362 = vpack.c.b16 %v338, %v332
      %v363 = vpack.c.b16 %v339, %v333
      %v364 = vpack.c.b16 %v340, %v334
      %v365 = vpack.c.b16 %v341, %v335
      %vm390 = vcmask 523264
      %v392 = vsel %vm390, %v269, 0
      %394 = vmatprep.subr.bf16.mxu0 0
      %395 = vmatpush1.bf16.msra.mxu0 0
      %396 = vmatprep.subr.bf16.mxu0 0
      %397 = vmatpush1.bf16.msra.mxu0 0
      %398 = vmatprep.subr.bf16.mxu0 0
      %399 = vmatpush1.bf16.msra.mxu0 0
      %400 = vmatprep.subr.bf16.mxu0 0
      %401 = vmatpush1.bf16.msra.mxu0 0
      %402 = vmatprep.subr.bf16.mxu0 %v361
      %403 = vmatpush1.bf16.msra.mxu0 %v360
      %404 = vmatprep.subr.bf16.mxu0 %v355
      %405 = vmatpush1.bf16.msra.mxu0 %v354
      %406 = vmatprep.subr.bf16.mxu0 %v349
      %407 = vmatpush1.bf16.msra.mxu0 %v348
      %408 = vmatprep.subr.bf16.mxu0 %v343
      %409 = vmatpush1.bf16.msra.mxu0 %v342
      %410 = vmatprep.subr.bf16.mxu0 0
      %411 = vmatpush2.bf16.msra.mxu0 0
      %412 = vmatprep.subr.bf16.mxu0 0
      %413 = vmatpush2.bf16.msra.mxu0 0
      %414 = vmatprep.subr.bf16.mxu0 0
      %415 = vmatpush2.bf16.msra.mxu0 0
      %416 = vmatprep.subr.bf16.mxu0 0
      %417 = vmatpush2.bf16.msra.mxu0 0
      %418 = vmatprep.subr.bf16.mxu0 0
      %419 = vmatpush2.bf16.msra.mxu0 0
      %420 = vmatprep.subr.bf16.mxu0 0
      %421 = vmatpush2.bf16.msra.mxu0 0
      %422 = vmatprep.subr.bf16.mxu0 0
      %423 = vmatpush2.bf16.msra.mxu0 0
      %424 = vmatprep.subr.bf16.mxu0 0
      %425 = vmatpush2.bf16.msra.mxu0 0
      %426 = vmatprep.mubr.bf16.mxu0 0
      %427 = vmatmul.mubr.bf16.gmra.mxu0 %v392
      %v428 = vpop.f32.mrf.mxu0
      %v429 = vadd.f32 0.0, %v428
      %v430 = vpop.f32.mrf.mxu0
      %v431 = vadd.f32 0.0, %v430
      %v432 = vpop.f32.mrf.mxu0
      %v433 = vadd.f32 0.0, %v432
      %v434 = vpop.f32.mrf.mxu0
      %v435 = vadd.f32 0.0, %v434
      %436 = vdwg.mxu0
      %437 = vmatprep.subr.bf16.mxu0 0
      %438 = vmatpush1.bf16.msra.mxu0 0
      %439 = vmatprep.subr.bf16.mxu0 0
      %440 = vmatpush1.bf16.msra.mxu0 0
      %441 = vmatprep.subr.bf16.mxu0 0
      %442 = vmatpush1.bf16.msra.mxu0 0
      %443 = vmatprep.subr.bf16.mxu0 0
      %444 = vmatpush1.bf16.msra.mxu0 0
      %445 = vmatprep.subr.bf16.mxu0 %v363
      %446 = vmatpush1.bf16.msra.mxu0 %v362
      %447 = vmatprep.subr.bf16.mxu0 %v357
      %448 = vmatpush1.bf16.msra.mxu0 %v356
      %449 = vmatprep.subr.bf16.mxu0 %v351
      %450 = vmatpush1.bf16.msra.mxu0 %v350
      %451 = vmatprep.subr.bf16.mxu0 %v345
      %452 = vmatpush1.bf16.msra.mxu0 %v344
      %453 = vmatprep.subr.bf16.mxu0 0
      %454 = vmatpush2.bf16.msra.mxu0 0
      %455 = vmatprep.subr.bf16.mxu0 0
      %456 = vmatpush2.bf16.msra.mxu0 0
      %457 = vmatprep.subr.bf16.mxu0 0
      %458 = vmatpush2.bf16.msra.mxu0 0
      %459 = vmatprep.subr.bf16.mxu0 0
      %460 = vmatpush2.bf16.msra.mxu0 0
      %461 = vmatprep.subr.bf16.mxu0 0
      %462 = vmatpush2.bf16.msra.mxu0 0
      %463 = vmatprep.subr.bf16.mxu0 0
      %464 = vmatpush2.bf16.msra.mxu0 0
      %465 = vmatprep.subr.bf16.mxu0 0
      %466 = vmatpush2.bf16.msra.mxu0 0
      %467 = vmatprep.subr.bf16.mxu0 0
      %468 = vmatpush2.bf16.msra.mxu0 0
      %469 = vmatprep.mubr.bf16.mxu0 0
      %470 = vmatmul.mubr.bf16.gmra.mxu0 %v392
      %v471 = vpop.f32.mrf.mxu0
      %v472 = vadd.f32 0.0, %v471
      %v473 = vpop.f32.mrf.mxu0
      %v474 = vadd.f32 0.0, %v473
      %v475 = vpop.f32.mrf.mxu0
      %v476 = vadd.f32 0.0, %v475
      %v477 = vpop.f32.mrf.mxu0
      %v478 = vadd.f32 0.0, %v477
      %479 = vdwg.mxu0
      %480 = vmatprep.subr.bf16.mxu0 0
      %481 = vmatpush1.bf16.msra.mxu0 0
      %482 = vmatprep.subr.bf16.mxu0 0
      %483 = vmatpush1.bf16.msra.mxu0 0
      %484 = vmatprep.subr.bf16.mxu0 0
      %485 = vmatpush1.bf16.msra.mxu0 0
      %486 = vmatprep.subr.bf16.mxu0 0
      %487 = vmatpush1.bf16.msra.mxu0 0
      %488 = vmatprep.subr.bf16.mxu0 %v365
      %489 = vmatpush1.bf16.msra.mxu0 %v364
      %490 = vmatprep.subr.bf16.mxu0 %v359
      %491 = vmatpush1.bf16.msra.mxu0 %v358
      %492 = vmatprep.subr.bf16.mxu0 %v353
      %493 = vmatpush1.bf16.msra.mxu0 %v352
      %494 = vmatprep.subr.bf16.mxu0 %v347
      %495 = vmatpush1.bf16.msra.mxu0 %v346
      %496 = vmatprep.subr.bf16.mxu0 0
      %497 = vmatpush2.bf16.msra.mxu0 0
      %498 = vmatprep.subr.bf16.mxu0 0
      %499 = vmatpush2.bf16.msra.mxu0 0
      %500 = vmatprep.subr.bf16.mxu0 0
      %501 = vmatpush2.bf16.msra.mxu0 0
      %502 = vmatprep.subr.bf16.mxu0 0
      %503 = vmatpush2.bf16.msra.mxu0 0
      %504 = vmatprep.subr.bf16.mxu0 0
      %505 = vmatpush2.bf16.msra.mxu0 0
      %506 = vmatprep.subr.bf16.mxu0 0
      %507 = vmatpush2.bf16.msra.mxu0 0
      %508 = vmatprep.subr.bf16.mxu0 0
      %509 = vmatpush2.bf16.msra.mxu0 0
      %510 = vmatprep.subr.bf16.mxu0 0
      %511 = vmatpush2.bf16.msra.mxu0 0
      %512 = vmatprep.mubr.bf16.mxu0 0
      %513 = vmatmul.mubr.bf16.gmra.mxu0 %v392
      %v514 = vpop.f32.mrf.mxu0
      %v515 = vadd.f32 0.0, %v514
      %v516 = vpop.f32.mrf.mxu0
      %v517 = vadd.f32 0.0, %v516
      %v518 = vpop.f32.mrf.mxu0
      %v519 = vadd.f32 0.0, %v518
      %v520 = vpop.f32.mrf.mxu0
      %v521 = vadd.f32 0.0, %v520
      %522 = vdwg.mxu0
      %v523 = vpack.c.bf16 %v433, %v429
      %v524 = vpack.c.bf16 %v435, %v431
      %v525 = vpack.c.bf16 %v476, %v472
      %v526 = vpack.c.bf16 %v478, %v474
      %v527 = vpack.c.bf16 %v519, %v515
      %v528 = vpack.c.bf16 %v521, %v517
      %v529 = vld [vmem:[%s1] sm:$0xf]
      %v530 = vld [vmem:[%s1 + $0x4] sm:$0xf]
      %v531 = vld [vmem:[%s1 + $0x8] sm:$0xf]
      %v532 = vld [vmem:[%s1 + $0xc] sm:$0xf]
      %v533 = vld [vmem:[%s3] sm:$0x3]
      %v535 = vlaneseq
      %v536 = vshrl.u32 %v535, 7
      %v537 = vsub.s32 0, %v536
      %v538 = vrot.slane %v533, %v537
      %v539 = vlaneseq
      %v540 = vshrl.u32 %v539, 7
      %v541 = vsub.s32 1, %v540
      %v542 = vrot.slane %v533, %v541
      %v549 = vunpack.c.l.b16 %v529
      %v550 = vunpack.c.l.b16 %v530
      %v551 = vunpack.c.l.b16 %v531
      %v552 = vunpack.c.l.b16 %v532
      %v553 = vpack.c.b16 %v550, %v549
      %v554 = vpack.c.b16 %v552, %v551
      %vm555 = vcmask 392192
      %v557 = vsel %vm555, %v553, 0
      %v560 = vsel %vm555, %v554, 0
      %562 = vmatprep.subr.bf16.mxu0 0
      %563 = vmatpush1.bf16.msra.mxu0 0
      %564 = vmatprep.subr.bf16.mxu0 0
      %565 = vmatpush1.bf16.msra.mxu0 0
      %566 = vmatprep.subr.bf16.mxu0 0
      %567 = vmatpush1.bf16.msra.mxu0 0
      %568 = vmatprep.subr.bf16.mxu0 0
      %569 = vmatpush1.bf16.msra.mxu0 0
      %570 = vmatprep.subr.bf16.mxu0 0
      %571 = vmatpush1.bf16.msra.mxu0 0
      %572 = vmatprep.subr.bf16.mxu0 %v528
      %573 = vmatpush1.bf16.msra.mxu0 %v527
      %574 = vmatprep.subr.bf16.mxu0 %v526
      %575 = vmatpush1.bf16.msra.mxu0 %v525
      %576 = vmatprep.subr.bf16.mxu0 %v524
      %577 = vmatpush1.bf16.msra.mxu0 %v523
      %578 = vmatprep.subr.bf16.mxu0 0
      %579 = vmatpush2.bf16.msra.mxu0 0
      %580 = vmatprep.subr.bf16.mxu0 0
      %581 = vmatpush2.bf16.msra.mxu0 0
      %582 = vmatprep.subr.bf16.mxu0 0
      %583 = vmatpush2.bf16.msra.mxu0 0
      %584 = vmatprep.subr.bf16.mxu0 0
      %585 = vmatpush2.bf16.msra.mxu0 0
      %586 = vmatprep.subr.bf16.mxu0 0
      %587 = vmatpush2.bf16.msra.mxu0 0
      %588 = vmatprep.subr.bf16.mxu0 0
      %589 = vmatpush2.bf16.msra.mxu0 0
      %590 = vmatprep.subr.bf16.mxu0 0
      %591 = vmatpush2.bf16.msra.mxu0 0
      %592 = vmatprep.subr.bf16.mxu0 0
      %593 = vmatpush2.bf16.msra.mxu0 0
      %594 = vmatprep.mubr.bf16.mxu0 0
      %595 = vmatmul.mubr.bf16.gmra.mxu0 %v557
      %v596 = vpop.f32.mrf.mxu0
      %v597 = vadd.f32 %v538, %v596
      %v598 = vpop.f32.mrf.mxu0
      %v599 = vadd.f32 %v542, %v598
      %v600 = vpop.f32.mrf.mxu0
      %v601 = vadd.f32 %v538, %v600
      %v602 = vpop.f32.mrf.mxu0
      %v603 = vadd.f32 %v542, %v602
      %604 = vmatprep.mubr.bf16.mxu0 0
      %605 = vmatmul.mubr.bf16.gmra.mxu0 %v560
      %v606 = vpop.f32.mrf.mxu0
      %v607 = vadd.f32 %v538, %v606
      %v608 = vpop.f32.mrf.mxu0
      %v609 = vadd.f32 %v542, %v608
      %v610 = vpop.f32.mrf.mxu0
      %v611 = vadd.f32 %v538, %v610
      %v612 = vpop.f32.mrf.mxu0
      %v613 = vadd.f32 %v542, %v612
      %614 = vdwg.mxu0
      %615 = vst [vmem:[%s232] sm:$0xff] %v597
      %616 = vst [vmem:[%s232 + $0x8] sm:$0xff] %v599
      %617 = vst [vmem:[%s232 + $0x10] sm:$0xff] %v601
      %618 = vst [vmem:[%s232 + $0x18] sm:$0xff] %v603
      %619 = vst [vmem:[%s232 + $0x20] sm:$0xff] %v607
      %620 = vst [vmem:[%s232 + $0x28] sm:$0xff] %v609
      %621 = vst [vmem:[%s232 + $0x30] sm:$0xff] %v611
      %622 = vst [vmem:[%s232 + $0x38] sm:$0xff] %v613
      %v623 = vadd.f32 %v597, %v601
      %v624 = vadd.f32 %v623, %v607
      %v625 = vadd.f32 %v624, %v611
      %v626 = vrot.slane %v625, 4
      %v627 = vadd.f32 %v625, %v626
      %v628 = vrot.slane %v627, 2
      %v629 = vadd.f32 %v627, %v628
      %v630 = vrot.slane %v629, 1
      %v631 = vadd.f32 %v629, %v630
      %v632 = vadd.f32 %v599, %v603
      %v633 = vadd.f32 %v632, %v609
      %v634 = vadd.f32 %v633, %v613
      %v635 = vrot.slane %v634, 4
      %v636 = vadd.f32 %v634, %v635
      %v637 = vrot.slane %v636, 2
      %v638 = vadd.f32 %v636, %v637
      %v639 = vrot.slane %v638, 1
      %v640 = vadd.f32 %v638, %v639
      %v643 = vcombine.low %v631, %v640
      %v645 = vunpack.c.l.s4 1966171168
      %v646 = vunpack.c.0.s8 %v645
      %v647 = vlaneseq
      %v648 = vshrl.u32 %v647, 7
      %v649 = vsub.s32 %v646, %v648
      %v650 = vrot.slane %v643, %v649
      %v652 = vunpack.c.l.s4 1966171168
      %v653 = vunpack.c.0.s8 %v652
      %v654 = vlaneseq
      %v655 = vshrl.u32 %v654, 7
      %v656 = vsub.s32 %v653, %v655
      %v657 = vrot.slane %v650, %v656
      %v659 = vlaneseq
      %vm660 = vcmp.ge.s32.totalorder %v659, 0
      %vm661 = vcmp.lt.s32.totalorder %v659, 256
      %vm662 = vmand %vm660, %vm661
      %663 = vst.msk [vmem:[%s237] ss:$2 sm:$0x3] %vm662, %v657
      %v664 = vmul.f32 %v597, %v597
      %v665 = vmul.f32 %v599, %v599
      %v666 = vmul.f32 %v601, %v601
      %v667 = vmul.f32 %v603, %v603
      %v668 = vmul.f32 %v607, %v607
      %v669 = vmul.f32 %v609, %v609
      %v670 = vmul.f32 %v611, %v611
      %v671 = vmul.f32 %v613, %v613
      %v672 = vadd.f32 %v664, %v666
      %v673 = vadd.f32 %v672, %v668
      %v674 = vadd.f32 %v673, %v670
      %v675 = vrot.slane %v674, 4
      %v676 = vadd.f32 %v674, %v675
      %v677 = vrot.slane %v676, 2
      %v678 = vadd.f32 %v676, %v677
      %v679 = vrot.slane %v678, 1
      %v680 = vadd.f32 %v678, %v679
      %v681 = vadd.f32 %v665, %v667
      %v682 = vadd.f32 %v681, %v669
      %v683 = vadd.f32 %v682, %v671
      %v684 = vrot.slane %v683, 4
      %v685 = vadd.f32 %v683, %v684
      %v686 = vrot.slane %v685, 2
      %v687 = vadd.f32 %v685, %v686
      %v688 = vrot.slane %v687, 1
      %v689 = vadd.f32 %v687, %v688
      %v692 = vcombine.low %v680, %v689
      %v694 = vunpack.c.l.s4 1966171168
      %v695 = vunpack.c.0.s8 %v694
      %v696 = vlaneseq
      %v697 = vshrl.u32 %v696, 7
      %v698 = vsub.s32 %v695, %v697
      %v699 = vrot.slane %v692, %v698
      %v701 = vunpack.c.l.s4 1966171168
      %v702 = vunpack.c.0.s8 %v701
      %v703 = vlaneseq
      %v704 = vshrl.u32 %v703, 7
      %v705 = vsub.s32 %v702, %v704
      %v706 = vrot.slane %v699, %v705
      %s708 = scalar_lea.vmem %s237, 1
      %709 = vst.msk [vmem:[%s708] ss:$2 sm:$0x3] %vm662, %v706
      %p710 = scmp.lt.s32.totalorder %s17, 1
      %s711 = scalar_select %p710, %s17, 1
      %s712 = smul.addr %s711, 8
      %s713 = smul.addr %s712, 8
      %s714 = scalar_lea.vmem %s4, %s713
      %p715 = scmp.lt.s32.totalorder %s17, 1
      %s716 = scalar_select %p715, %s17, 1
      %s717 = smul.addr %s716, 2
      %s718 = smul.addr %s717, 2
      %s719 = scalar_lea.vmem %s5, %s718
      // Predicated region
      $region37: #{up_block_forward.2} parent=35 // pred_check
        %p720 = pneg %p124
      $region38: #{up_block_forward.2} parent=35 // pred_check_branch
        %722 = sbr.rel (%p720) target = $region40
      $region39: #{up_block_forward.2} parent=35 // pred_region
        _
      $region40: #{up_block_forward.2} parent=35 // pred_fallthru
        _
      // Predicated region
      $region41: #{up_block_forward.2} parent=35 // pred_check
        %p723 = pneg %p150
      $region42: #{up_block_forward.2} parent=35 // pred_check_branch
        %725 = sbr.rel (%p723) target = $region44
      $region43: #{up_block_forward.2} parent=35 // pred_region
        _
      $region44: #{up_block_forward.2} parent=35 // pred_fallthru
        _
    $region36: #{up_block_forward.2} parent=5 // pred_fallthru
      _
    %p726 = scmp.le.s32.totalorder 2, %s12
    // Predicated region
    $region45: #{up_block_forward.2} parent=5 // pred_check
      %p727 = pneg %p726
    $region46: #{up_block_forward.2} parent=5 // pred_check_branch
      %729 = sbr.rel (%p727) target = $region48
    $region47: #{up_block_forward.2} parent=5 // pred_region
      %s730 = ssub.s32 %s12, 2
      // Predicated region
      $region49: #{up_block_forward.2} parent=47 // pred_check
        %p731 = pneg %p130
      $region50: #{up_block_forward.2} parent=47 // pred_check_branch
        %733 = sbr.rel (%p731) target = $region52
      $region51: #{up_block_forward.2} parent=47 // pred_region
        %p734 = scmp.lt.s32.totalorder %s18, 1
        %s735 = scalar_select %p734, %s18, 1
        %s736 = smul.addr %s735, 8
        %s737 = smul.addr %s736, 8
        %s738 = scalar_lea.vmem %s4, %s737
      $region52: #{up_block_forward.2} parent=47 // pred_fallthru
        _
      // Predicated region
      $region53: #{up_block_forward.2} parent=47 // pred_check
        %p739 = pneg %p156
      $region54: #{up_block_forward.2} parent=47 // pred_check_branch
        %741 = sbr.rel (%p739) target = $region56
      $region55: #{up_block_forward.2} parent=47 // pred_region
        %p742 = scmp.lt.s32.totalorder %s18, 1
        %s743 = scalar_select %p742, %s18, 1
        %s744 = smul.addr %s743, 2
        %s745 = smul.addr %s744, 2
        %s746 = scalar_lea.vmem %s5, %s745
      $region56: #{up_block_forward.2} parent=47 // pred_fallthru
        _
    $region48: #{up_block_forward.2} parent=5 // pred_fallthru
      _
  $region6: #{up_block_forward.2} parent=0 // loop_footer
    %s16 = sadd.s32 1, %s12
  $region7: #{up_block_forward.2} parent=0 // loop_footer_branch
    %11 = sbr.rel target = $region3
  $region8: #{up_block_forward.2} parent=0 // loop_exit
    _

</llo_original>
